<compile_context>
chip_gen: v7x
topology: tpu7x:2x2x1
jax: 0.10.0
libtpu: 0.0.40
codegen_flags: <defaults>
</compile_context>

<pallas_src>
import math

import jax
import jax.numpy as jnp
from jax.experimental import pallas as pl
from jax.experimental.pallas import tpu as pltpu


def _round_up(x: int, m: int) -> int:
    return (x + m - 1) // m * m


# -----------------------------------------------------------------------------
# Kernels: tiled matmul, K-axis reduction (P1 + P3)
# -----------------------------------------------------------------------------
def _matmul_kernel_acc(x_ref, w_ref, o_ref, acc_ref):
    """Generic-output-dtype path: f32 scratch accumulator, cast on final step."""
    @pl.when(pl.program_id(2) == 0)
    def _():
        acc_ref[...] = jnp.zeros_like(acc_ref)

    acc_ref[...] += jnp.dot(
        x_ref[...], w_ref[...], preferred_element_type=jnp.float32
    )

    @pl.when(pl.program_id(2) == pl.num_programs(2) - 1)
    def _():
        o_ref[...] = acc_ref[...].astype(o_ref.dtype)


def _matmul_kernel_f32out(x_ref, w_ref, o_ref):
    """f32-output path: accumulate directly into the (VMEM-resident) output
    block — output block index is invariant along k, so no scratch needed."""
    @pl.when(pl.program_id(2) == 0)
    def _():
        o_ref[...] = jnp.zeros_like(o_ref)

    o_ref[...] += jnp.dot(
        x_ref[...], w_ref[...], preferred_element_type=jnp.float32
    )


# -----------------------------------------------------------------------------
# Tile selection
# -----------------------------------------------------------------------------
def _tile_caps():
    """Generation-aware tile caps.

    Conservative config (tm=512, tn=1024, tk=512): ~10 MiB working set, fits
    v7x's 32 MiB scoped / 64 MiB physical VMEM, AI ~341 flop/byte (compute-
    bound on v5e/v7x).  On 128 MiB-VMEM chips (v5e/v6e) bump to tm=1024,
    tn=2048 -> AI ~682 flop/byte, compute-bound even on v6e's 918 TF/s MXU.
    """
    tm_cap, tn_cap, tk_cap = 512, 1024, 512
    try:
        vmem = pltpu.get_tpu_info().vmem_capacity_bytes
        if vmem >= (100 << 20):  # v5e / v6e: 128 MiB physical VMEM
            tm_cap, tn_cap = 1024, 2048
    except Exception:
        pass  # fall back to the config that is safe on every generation
    return tm_cap, tn_cap, tk_cap


def _pick_tile(dim: int, cap: int, align: int) -> int:
    """Pick a tile size (multiple of `align`, <= cap) for `dim`, preferring the
    largest tile whose zero-padding waste is small (<= 1/8 of the padded
    extent); fall back to the minimal-waste tile otherwise."""
    if dim <= cap:
        return _round_up(dim, align)  # single block covering the whole dim
    cap = (cap // align) * align
    best_t = align
    best_waste = _round_up(dim, align) - dim
    t = cap
    while t >= align:
        padded = _round_up(dim, t)
        waste = padded - dim
        if waste * 8 <= padded:
            return t
        if waste < best_waste:
            best_t, best_waste = t, waste
        t -= align
    return best_t


def _vmem_limit_bytes(tm: int, tn: int, tk: int, f32_out: bool) -> int:
    """Budget: double-buffered bf16 input blocks + double-buffered output block
    (counted at f32 width) + f32 acc scratch (non-f32 outputs only), x1.5."""
    in_bytes = 2 * (tm * tk * 2 + tk * tn * 2)
    out_bytes = 2 * tm * tn * 4
    acc_bytes = 0 if f32_out else tm * tn * 4
    need = in_bytes + out_bytes + acc_bytes
    return min(100 << 20, max(32 << 20, int(need * 1.5)))


# -----------------------------------------------------------------------------
# pallas_call wrapper (dims already padded to tile multiples)
# -----------------------------------------------------------------------------
def _linear_matmul(x2d, w_t, out_dtype, tm, tn, tk):
    M, K = x2d.shape
    K2, N = w_t.shape
    assert K == K2 and M % tm == 0 and N % tn == 0 and K % tk == 0
    grid = (M // tm, N // tn, K // tk)

    f32_out = jnp.dtype(out_dtype) == jnp.dtype(jnp.float32)
    kernel = _matmul_kernel_f32out if f32_out else _matmul_kernel_acc
    scratch = [] if f32_out else [pltpu.VMEM((tm, tn), jnp.float32)]

    cost = pl.CostEstimate(
        flops=2 * M * N * K,
        transcendentals=0,
        bytes_accessed=(
            grid[1] * M * K * x2d.dtype.itemsize      # x re-streamed per j
            + grid[0] * K * N * w_t.dtype.itemsize    # w re-streamed per i
            + M * N * jnp.dtype(out_dtype).itemsize
        ),
    )

    return pl.pallas_call(
        kernel,
        out_shape=jax.ShapeDtypeStruct((M, N), out_dtype),
        grid_spec=pltpu.PrefetchScalarGridSpec(
            num_scalar_prefetch=0,
            grid=grid,
            in_specs=[
                pl.BlockSpec((tm, tk), lambda i, j, k: (i, k)),
                pl.BlockSpec((tk, tn), lambda i, j, k: (k, j)),
            ],
            out_specs=pl.BlockSpec((tm, tn), lambda i, j, k: (i, j)),
            scratch_shapes=scratch,
        ),
        compiler_params=pltpu.CompilerParams(
            dimension_semantics=("parallel", "parallel", "arbitrary"),
            vmem_limit_bytes=_vmem_limit_bytes(tm, tn, tk, f32_out),
        ),
        cost_estimate=cost,
    )(x2d, w_t)


# -----------------------------------------------------------------------------
# Module-equivalent wrapper
# -----------------------------------------------------------------------------
class LinearPallas:
    def __init__(self, d_in: int, d_out: int, key, param_dtype=jnp.float32):
        std = math.sqrt(2.0 / (d_in + d_out))
        # trunc_normal_ with a=-3*std, b=3*std == std * truncated_normal(-3, 3)
        self.weight = std * jax.random.truncated_normal(
            key, -3.0, 3.0, (d_out, d_in), dtype=param_dtype
        )
        self.d_in = d_in
        self.d_out = d_out

        # Tile choices along K/N depend only on the (static) weight shape, so
        # fix them here and pad the weight exactly once.
        tm_cap, tn_cap, tk_cap = _tile_caps()
        self._tm_cap = tm_cap
        self._tk = _pick_tile(d_in, tk_cap, 128)
        self._tn = _pick_tile(d_out, tn_cap, 128)
        self._k_pad = _round_up(d_in, self._tk)
        self._n_pad = _round_up(d_out, self._tn)

        # Pre-transpose, cast to bf16 and pad ONCE (static parameter; avoids a
        # per-call HBM transpose/cast/pad of the full weight).
        w_t = jnp.asarray(self.weight.T, dtype=jnp.bfloat16)
        if (self._k_pad, self._n_pad) != (d_in, d_out):
            w_t = jnp.pad(
                w_t, ((0, self._k_pad - d_in), (0, self._n_pad - d_out))
            )
        self.w_t_bf16 = w_t

    def __call__(self, x):
        # x: (..., d_in) -> (..., d_out)
        lead = x.shape[:-1]
        out_dtype = x.dtype

        # TODO(synk): the bf16 cast / pad of x is XLA glue (one extra HBM pass
        # for very large M); could be folded into the kernel via an f32 input
        # path if profiling shows it matters.
        x2d = x.reshape(-1, self.d_in).astype(jnp.bfloat16)
        M = x2d.shape[0]

        tm = _pick_tile(M, self._tm_cap, 16)
        m_pad = _round_up(M, tm)
        tn = self._tn

        # v7x megacore: guarantee >= 2 parallel output blocks so both
        # TensorCores get work (free on single-TC v5e/v6e).
        if (m_pad // tm) * (self._n_pad // tn) < 2:
            if tm >= 32:
                tm //= 2           # still a multiple of 8, still divides m_pad
            elif tn % 256 == 0:
                tn //= 2           # still a multiple of 128, divides n_pad

        if (m_pad, self._k_pad) != (M, self.d_in):
            x2d = jnp.pad(
                x2d, ((0, m_pad - M), (0, self._k_pad - self.d_in))
            )

        y2d = _linear_matmul(x2d, self.w_t_bf16, out_dtype, tm, tn, self._tk)

        if (m_pad, self._n_pad) != (M, self.d_out):
            y2d = y2d[:M, : self.d_out]
        return y2d.reshape(*lead, self.d_out)


if __name__ == "__main__":
    key = jax.random.PRNGKey(0)
    k_w, k_x, k_w2, k_x2 = jax.random.split(key, 4)

    # --- aligned shapes -------------------------------------------------
    batch, seq, d_in, d_out = 2, 8, 128, 256
    lin = LinearPallas(d_in, d_out, k_w)
    x = jax.random.normal(k_x, (batch, seq, d_in), dtype=jnp.float32)
    y = jax.block_until_ready(lin(x))

    y_ref = jnp.einsum("...i,oi->...o", x, lin.weight)
    assert y.shape == (batch, seq, d_out)
    # bf16 MXU operands -> expect ~1e-2 level agreement, not 1e-4.
    assert jnp.allclose(y, y_ref, atol=2e-2, rtol=2e-2), float(
        jnp.max(jnp.abs(y - y_ref))
    )

    # --- non-tile-multiple shapes (exercise padding paths) ---------------
    b2, s2, di2, do2 = 3, 5, 200, 136
    lin2 = LinearPallas(di2, do2, k_w2)
    x2 = jax.random.normal(k_x2, (b2, s2, di2), dtype=jnp.float32)
    y2 = jax.block_until_ready(lin2(x2))

    y2_ref = jnp.einsum("...i,oi->...o", x2, lin2.weight)
    assert y2.shape == (b2, s2, do2)
    assert jnp.allclose(y2, y2_ref, atol=2e-2, rtol=2e-2), float(
        jnp.max(jnp.abs(y2 - y2_ref))
    )

    print("KERNEL_OK")
</pallas_src>

<mosaic_0001>
module attributes {stable_mosaic.version = 11 : i64} {
  func.func @_matmul_kernel_f32out(%arg0: i32, %arg1: i32, %arg2: i32, %arg3: memref<16x128xbf16, #tpu.memory_space<vmem>>, %arg4: memref<128x128xbf16, #tpu.memory_space<vmem>>, %arg5: memref<16x128xf32, #tpu.memory_space<vmem>>) attributes {dimension_semantics = [#tpu.dimension_semantics<parallel>, #tpu.dimension_semantics<parallel>, #tpu.dimension_semantics<arbitrary>], iteration_bounds = array<i64: 1, 2, 1>, scalar_prefetch = 0 : i64, scratch_operands = 0 : i64, tpu.core_type = #tpu.core_type<tc>, window_params = [{transform_indices = @transform_0, window_bounds = array<i64: 16, 128>}, {transform_indices = @transform_1, window_bounds = array<i64: 128, 128>}, {transform_indices = @transform_2, window_bounds = array<i64: 16, 128>}]} {
    %c0_i32 = arith.constant 0 : i32
    %0 = arith.cmpi eq, %arg2, %c0_i32 : i32
    %1 = arith.extui %0 : i1 to i32
    %c0_i32_0 = arith.constant 0 : i32
    %2 = arith.cmpi ne, %1, %c0_i32_0 : i32
    scf.if %2 {
      %cst_8 = arith.constant 0.000000e+00 : f32
      %9 = vector.broadcast %cst_8 : f32 to vector<16x128xf32>
      %c0_9 = arith.constant 0 : index
      %c0_10 = arith.constant 0 : index
      %10 = vector.load %arg5[%c0_9, %c0_10] : memref<16x128xf32, #tpu.memory_space<vmem>>, vector<16x128xf32>
      tpu.vector_store %arg5[%c0_9, %c0_10], %9 {strides = array<i32>} : memref<16x128xf32, #tpu.memory_space<vmem>>, vector<16x128xf32>,
    } else {
    }
    %c0 = arith.constant 0 : index
    %c0_1 = arith.constant 0 : index
    %3 = vector.load %arg5[%c0, %c0_1] : memref<16x128xf32, #tpu.memory_space<vmem>>, vector<16x128xf32>
    %c0_2 = arith.constant 0 : index
    %c0_3 = arith.constant 0 : index
    %4 = vector.load %arg3[%c0_2, %c0_3] : memref<16x128xbf16, #tpu.memory_space<vmem>>, vector<16x128xbf16>
    %c0_4 = arith.constant 0 : index
    %c0_5 = arith.constant 0 : index
    %5 = vector.load %arg4[%c0_4, %c0_5] : memref<128x128xbf16, #tpu.memory_space<vmem>>, vector<128x128xbf16>
    %cst = arith.constant dense<0.000000e+00> : vector<16x128xf32>
    %6 = tpu.matmul %4, %5, %cst {dimension_numbers = #tpu.dot_dimension_numbers<[1], [0], [0], [1], [0, 0, 1, 1], [], []>} : vector<16x128xbf16>, vector<128x128xbf16>, vector<16x128xf32> -> vector<16x128xf32>
    %7 = arith.addf %3, %6 : vector<16x128xf32>
    %c0_6 = arith.constant 0 : index
    %c0_7 = arith.constant 0 : index
    %8 = vector.load %arg5[%c0_6, %c0_7] : memref<16x128xf32, #tpu.memory_space<vmem>>, vector<16x128xf32>
    tpu.vector_store %arg5[%c0_6, %c0_7], %7 {strides = array<i32>} : memref<16x128xf32, #tpu.memory_space<vmem>>, vector<16x128xf32>,
    return
  }
  func.func @transform_0(%arg0: i32, %arg1: i32, %arg2: i32) -> (i32, i32) {
    %c0_i32 = arith.constant 0 : i32
    return %arg0, %arg2 : i32, i32
  }
  func.func @transform_1(%arg0: i32, %arg1: i32, %arg2: i32) -> (i32, i32) {
    %c0_i32 = arith.constant 0 : i32
    return %arg2, %arg1 : i32, i32
  }
  func.func @transform_2(%arg0: i32, %arg1: i32, %arg2: i32) -> (i32, i32) {
    %c0_i32 = arith.constant 0 : i32
    return %arg0, %arg1 : i32, i32
  }
}

</mosaic_0001>

<llo_original>
// kernel: tpu_custom_call.1
$region0: #{tpu_custom_call.1}
  #allocation0 [shape = 'u32[]', space=smem, size = 0x4, offset = 0x4, fixed_abs, tag = 'smem constant byte address 0x4 - core index']
  #allocation1 [shape = 'u32[144,128]{1,0:T(1,128)}', space=vmem, size = 0x12000, scoped, tag = 'internal scratch']
  %s0 = inlined_call_operand.hbm [shape: bf16[16,128], index: 0, kind: input, shape index: {}]
  %s1 = inlined_call_operand.hbm [shape: bf16[128,256], index: 1, kind: input, shape index: {}]
  %s2 = inlined_call_operand.hbm [shape: f32[16,256], index: 2, kind: output, shape index: {}]
  %s3 = sld [smem:[#allocation0]]
  $region53: #{tpu_custom_call.1} parent=0
    _
  %s5 = ssub.s32 1, %s3
  %s6 = scalar_select 0, %s5, %s3
  $region1: #{tpu_custom_call.1} parent=0
    #allocation2 [shape = 'u8[4096]{0}', space=vmem, size = 0x1000, scoped, tag = 'input window, operand 0, single buffered']
    #allocation3 [shape = 's32[2]{0}', space=sflag, size = 0x8, scoped, tag = 'scoped memory for tpu_custom_call.1']
    #allocation4 [shape = 's32[2]{0}', space=sflag, size = 0x8, scoped, tag = 'scoped memory for tpu_custom_call.1']
    #allocation5 [shape = 'u8[65536]{0}', space=vmem, size = 0x10000, scoped, tag = 'input window, operand 1']
    #allocation6 [shape = 's32[2]{0}', space=sflag, size = 0x8, scoped, tag = 'scoped memory for tpu_custom_call.1']
    #allocation7 [shape = 'u8[16384]{0}', space=vmem, size = 0x4000, scoped, tag = 'output window, operand 0']
    %7 = vsyncpa [#allocation3], 0
    %8 = vsyncpa [#allocation6], 0
    %s9 = scalar_lea.sflag [#allocation6], 1
    %10 = vsyncpa %s9, 0
    %11 = vsyncpa [#allocation4], 0
    %s12 = scalar_lea.sflag [#allocation4], 1
    %13 = vsyncpa %s12, 0
    loop: start=0, step=1, limit=4
    $region2: #{tpu_custom_call.1} parent=1 // loop_pre_header
      _
    $region3: #{tpu_custom_call.1} parent=1 // loop_header
      %s15 = sphi 0, %s19
      %p16 = scmp.ge.s32.totalorder %s15, 4
      %s22 = sphi 0, %s41
      %s23 = sphi 0, %s37
      %s24 = sphi 0, %s33
      %s25 = sphi 0, %s22
      %s26 = sphi 0, %s23
      %s27 = sphi 0, %s24
      %s28 = sphi 0, %s25
      %s29 = sphi 0, %s26
      %s30 = sphi 0, %s27
      %s46 = sphi 0, %s48
      %s49 = sphi 0, %s46
      %s50 = sphi 0, %s49
      %s66 = sphi 0, %s50
      %s74 = sphi 0, %s76
      %s77 = sphi 0, %s74
      %s78 = sphi 0, %s77
      %s94 = sphi 0, %s78
      %s102 = sphi 0, %s104
      %s105 = sphi 0, %s102
      %s106 = sphi 0, %s105
      %s122 = sphi 0, %s106
    $region4: #{tpu_custom_call.1} parent=1 // loop_header_branch
      %18 = sbr.rel (%p16) target = $region8
    $region5: #{tpu_custom_call.1} parent=1 // loop_body
      %s20 = ssub.s32 %s15, 1
      %s21 = ssub.s32 %s15, 2
      %s31 = sadd.s32 1, %s24
      %p32 = scmp.ge.s32.totalorder %s31, 1
      %s33 = scalar_select %p32, 0, %s31
      %s34 = sadd.s32 1, %s23
      %s35 = scalar_select %p32, %s34, %s23
      %p36 = scmp.ge.s32.totalorder %s35, 2
      %s37 = scalar_select %p36, 0, %s35
      %s38 = sadd.s32 1, %s22
      %s39 = scalar_select %p36, %s38, %s22
      %p40 = scmp.ge.s32.totalorder %s39, 1
      %s41 = scalar_select %p40, 0, %s39
      %s42 = ssub.s32 %s22, %s41
      %s43 = ssub.s32 %s24, %s33
      %s44 = sor.u32 %s42, %s43
      %p45 = scmp.eq.s32.totalorder %s44, 0
      %s47 = sadd.s32 %s46, 1
      %s48 = scalar_select %p45, %s46, %s47
      %p51 = pneg %p45
      %p52 = scmp.eq.s32.totalorder %s15, 1
      %p53 = por %p51, %p52
      %p54 = scmp.ne.s32.totalorder %s46, %s49
      %p55 = scmp.eq.s32.totalorder %s15, 0
      %p56 = por %p54, %p55
      %p57 = scmp.ne.s32.totalorder %s46, %s49
      %p58 = scmp.eq.s32.totalorder %s20, 1
      %p59 = por %p57, %p58
      %p60 = scmp.ne.s32.totalorder %s49, %s50
      %p61 = scmp.eq.s32.totalorder %s20, 0
      %p62 = por %p60, %p61
      %p63 = scmp.ne.s32.totalorder %s49, %s50
      %p64 = scmp.eq.s32.totalorder %s21, 1
      %p65 = por %p63, %p64
      %p67 = scmp.ne.s32.totalorder %s50, %s66
      %p68 = scmp.eq.s32.totalorder %s21, 0
      %p69 = por %p67, %p68
      %s70 = ssub.s32 %s24, %s33
      %s71 = ssub.s32 %s23, %s37
      %s72 = sor.u32 %s70, %s71
      %p73 = scmp.eq.s32.totalorder %s72, 0
      %s75 = sadd.s32 %s74, 1
      %s76 = scalar_select %p73, %s74, %s75
      %p79 = pneg %p73
      %p80 = scmp.eq.s32.totalorder %s15, 1
      %p81 = por %p79, %p80
      %p82 = scmp.ne.s32.totalorder %s74, %s77
      %p83 = scmp.eq.s32.totalorder %s15, 0
      %p84 = por %p82, %p83
      %p85 = scmp.ne.s32.totalorder %s74, %s77
      %p86 = scmp.eq.s32.totalorder %s20, 1
      %p87 = por %p85, %p86
      %p88 = scmp.ne.s32.totalorder %s77, %s78
      %p89 = scmp.eq.s32.totalorder %s20, 0
      %p90 = por %p88, %p89
      %p91 = scmp.ne.s32.totalorder %s77, %s78
      %p92 = scmp.eq.s32.totalorder %s21, 1
      %p93 = por %p91, %p92
      %p95 = scmp.ne.s32.totalorder %s78, %s94
      %p96 = scmp.eq.s32.totalorder %s21, 0
      %p97 = por %p95, %p96
      %s98 = ssub.s32 %s22, %s41
      %s99 = ssub.s32 %s23, %s37
      %s100 = sor.u32 %s98, %s99
      %p101 = scmp.eq.s32.totalorder %s100, 0
      %s103 = sadd.s32 %s102, 1
      %s104 = scalar_select %p101, %s102, %s103
      %p107 = pneg %p101
      %p108 = scmp.eq.s32.totalorder %s15, 1
      %p109 = por %p107, %p108
      %p110 = scmp.ne.s32.totalorder %s102, %s105
      %p111 = scmp.eq.s32.totalorder %s15, 0
      %p112 = por %p110, %p111
      %p113 = scmp.ne.s32.totalorder %s102, %s105
      %p114 = scmp.eq.s32.totalorder %s20, 1
      %p115 = por %p113, %p114
      %p116 = scmp.ne.s32.totalorder %s105, %s106
      %p117 = scmp.eq.s32.totalorder %s20, 0
      %p118 = por %p116, %p117
      %p119 = scmp.ne.s32.totalorder %s105, %s106
      %p120 = scmp.eq.s32.totalorder %s21, 1
      %p121 = por %p119, %p120
      %p123 = scmp.ne.s32.totalorder %s106, %s122
      %p124 = scmp.eq.s32.totalorder %s21, 0
      %p125 = por %p123, %p124
      %p126 = scmp.le.s32.totalorder 1, %s15
      %p127 = scmp.lt.s32.totalorder %s15, 3
      %p128 = pnand %p126, %p127
      %p129 = pneg %p128
      // Predicated region
      $region9: #{tpu_custom_call.1} parent=5 // pred_check
        _
      $region10: #{tpu_custom_call.1} parent=5 // pred_check_branch
        %131 = sbr.rel (%p128) target = $region12
      $region11: #{tpu_custom_call.1} parent=5 // pred_region
        %s132 = ssub.s32 %s15, 1
        // Predicated region
        $region13: #{tpu_custom_call.1} parent=11 // pred_check
          %p133 = pneg %p62
        $region14: #{tpu_custom_call.1} parent=11 // pred_check_branch
          %135 = sbr.rel (%p133) target = $region16
        $region15: #{tpu_custom_call.1} parent=11 // pred_region
          %s136 = smul.u32 2, %s25
          %s138 = ssub.s32 128, 128
          %139 = vsyncadd [#allocation3], %s138
          %s140 = sadd.s32 %s27, %s136
          %s141 = smul.addr %s140, 64
          %s142 = scalar_lea.hbm %s0, %s141
          %s143 = sshll.u32 [#allocation2], 4
          %s144 = int_to_ptr.vmem [resolvable:$true] %s143
          %149 = dma.hbm_to_vmem [thread:$0]  %s142, 128, %s144, [#allocation3], 64, 64, 4
        $region16: #{tpu_custom_call.1} parent=11 // pred_fallthru
          _
      $region12: #{tpu_custom_call.1} parent=5 // pred_fallthru
        _
      %p150 = scmp.lt.s32.totalorder %s15, 2
      // Predicated region
      $region17: #{tpu_custom_call.1} parent=5 // pred_check
        %p151 = pneg %p150
      $region18: #{tpu_custom_call.1} parent=5 // pred_check_branch
        %153 = sbr.rel (%p151) target = $region20
      $region19: #{tpu_custom_call.1} parent=5 // pred_region
        // Predicated region
        $region21: #{tpu_custom_call.1} parent=19 // pred_check
          %p154 = pneg %p84
        $region22: #{tpu_custom_call.1} parent=19 // pred_check_branch
          %156 = sbr.rel (%p154) target = $region24
        $region23: #{tpu_custom_call.1} parent=19 // pred_region
          %s157 = sand.u32 %s74, 1
          %s158 = scalar_lea.sflag [#allocation6], %s157
          %s159 = sand.u32 %s74, 1
          %s160 = smul.addr %s159, 64
          %s161 = scalar_lea.vmem [#allocation5], %s160
          %s162 = smul.u32 16, %s24
          %s164 = ssub.s32 1024, 1024
          %165 = vsyncadd %s158, %s164
          %s166 = smul.addr %s162, 2
          %s167 = sadd.s32 %s23, %s166
          %s168 = smul.addr %s167, 64
          %s169 = scalar_lea.hbm %s1, %s168
          %s170 = sshll.u32 %s161, 4
          %s171 = int_to_ptr.vmem [resolvable:$true] %s170
          %176 = dma.hbm_to_vmem [thread:$0]  %s169, 1024, %s171, %s158, 128, 64, 4
        $region24: #{tpu_custom_call.1} parent=19 // pred_fallthru
          _
      $region20: #{tpu_custom_call.1} parent=5 // pred_fallthru
        _
      %p177 = scmp.le.s32.totalorder 1, %s15
      %p178 = scmp.lt.s32.totalorder %s15, 3
      %p179 = pnand %p177, %p178
      %p180 = pneg %p179
      // Predicated region
      $region25: #{tpu_custom_call.1} parent=5 // pred_check
        _
      $region26: #{tpu_custom_call.1} parent=5 // pred_check_branch
        %182 = sbr.rel (%p179) target = $region28
      $region27: #{tpu_custom_call.1} parent=5 // pred_region
        %s183 = ssub.s32 %s15, 1
        // Predicated region
        $region29: #{tpu_custom_call.1} parent=27 // pred_check
          %p184 = pneg %p62
        $region30: #{tpu_custom_call.1} parent=27 // pred_check_branch
          %186 = sbr.rel (%p184) target = $region32
        $region31: #{tpu_custom_call.1} parent=27 // pred_region
          %187 = dma.done [#allocation3], 128
        $region32: #{tpu_custom_call.1} parent=27 // pred_fallthru
          _
        %s188 = sand.u32 %s77, 1
        %s189 = scalar_lea.sflag [#allocation6], %s188
        %s190 = sand.u32 %s77, 1
        %s191 = smul.addr %s190, 64
        %s192 = scalar_lea.vmem [#allocation5], %s191
        // Predicated region
        $region33: #{tpu_custom_call.1} parent=27 // pred_check
          %p193 = pneg %p90
        $region34: #{tpu_custom_call.1} parent=27 // pred_check_branch
          %195 = sbr.rel (%p193) target = $region36
        $region35: #{tpu_custom_call.1} parent=27 // pred_region
          %196 = dma.done %s189, 1024
        $region36: #{tpu_custom_call.1} parent=27 // pred_fallthru
          _
        %p197 = pneg %p62
        %p198 = pneg %p59
        %s199 = sand.u32 %s77, 1
        %s200 = scalar_lea.sflag [#allocation6], %s199
        %s201 = sand.u32 %s77, 1
        %s202 = smul.addr %s201, 64
        %s203 = scalar_lea.vmem [#allocation5], %s202
        %p204 = pneg %p90
        %p205 = pneg %p87
        %p206 = pneg %p118
        %p207 = pneg %p115
        %s208 = sand.u32 %s105, 1
        %s209 = scalar_lea.sflag [#allocation4], %s208
        %s210 = sand.u32 %s105, 1
        %s211 = smul.addr %s210, 16
        %s212 = scalar_lea.vmem [#allocation7], %s211
        %s213 = smul.u32 2, %s25
        %s214 = smul.u32 16, %s27
        %s215 = smul.u32 2, %s25
        %p217 = scmp.eq.s32.totalorder %s27, 0
        // Predicated region
        $region37: #{tpu_custom_call.1} parent=27 // pred_check
          %p218 = pneg %p217
        $region38: #{tpu_custom_call.1} parent=27 // pred_check_branch
          %220 = sbr.rel (%p218) target = $region40
        $region39: #{tpu_custom_call.1} parent=27 // pred_region
          %221 = vst [vmem:[%s212] sm:$0xff] 0.0
          %222 = vst [vmem:[%s212 + $0x8] sm:$0xff] 0.0
        $region40: #{tpu_custom_call.1} parent=27 // pred_fallthru
          _
        %v223 = vld [vmem:[%s212] sm:$0xff]
        %v224 = vld [vmem:[%s212 + $0x8] sm:$0xff]
        %v225 = vld [vmem:[#allocation2] sm:$0xf]
        %v226 = vld [vmem:[#allocation2 + $0x4] sm:$0xf]
        %v227 = vld [vmem:[%s192] sm:$0xf]
        %v228 = vld [vmem:[%s192 + $0x4] sm:$0xf]
        %v229 = vld [vmem:[%s192 + $0x8] sm:$0xf]
        %v230 = vld [vmem:[%s192 + $0xc] sm:$0xf]
        %v231 = vld [vmem:[%s192 + $0x10] sm:$0xf]
        %v232 = vld [vmem:[%s192 + $0x14] sm:$0xf]
        %v233 = vld [vmem:[%s192 + $0x18] sm:$0xf]
        %v234 = vld [vmem:[%s192 + $0x1c] sm:$0xf]
        %v235 = vld [vmem:[%s192 + $0x20] sm:$0xf]
        %v236 = vld [vmem:[%s192 + $0x24] sm:$0xf]
        %v237 = vld [vmem:[%s192 + $0x28] sm:$0xf]
        %v238 = vld [vmem:[%s192 + $0x2c] sm:$0xf]
        %v239 = vld [vmem:[%s192 + $0x30] sm:$0xf]
        %v240 = vld [vmem:[%s192 + $0x34] sm:$0xf]
        %v241 = vld [vmem:[%s192 + $0x38] sm:$0xf]
        %v242 = vld [vmem:[%s192 + $0x3c] sm:$0xf]
        %v245 = vunpack.c.l.b16 %v225
        %v246 = vunpack.c.l.b16 %v226
        %v247 = vpack.c.b16 %v246, %v245
        %v265 = vunpack.c.l.b16 %v227
        %v266 = vunpack.c.l.b16 %v228
        %v267 = vunpack.c.l.b16 %v229
        %v268 = vunpack.c.l.b16 %v230
        %v269 = vunpack.c.l.b16 %v231
        %v270 = vunpack.c.l.b16 %v232
        %v271 = vunpack.c.l.b16 %v233
        %v272 = vunpack.c.l.b16 %v234
        %v273 = vunpack.c.l.b16 %v235
        %v274 = vunpack.c.l.b16 %v236
        %v275 = vunpack.c.l.b16 %v237
        %v276 = vunpack.c.l.b16 %v238
        %v277 = vunpack.c.l.b16 %v239
        %v278 = vunpack.c.l.b16 %v240
        %v279 = vunpack.c.l.b16 %v241
        %v280 = vunpack.c.l.b16 %v242
        %v281 = vpack.c.b16 %v266, %v265
        %v282 = vpack.c.b16 %v268, %v267
        %v283 = vpack.c.b16 %v270, %v269
        %v284 = vpack.c.b16 %v272, %v271
        %v285 = vpack.c.b16 %v274, %v273
        %v286 = vpack.c.b16 %v276, %v275
        %v287 = vpack.c.b16 %v278, %v277
        %v288 = vpack.c.b16 %v280, %v279
        %297 = vmatprep.subr.bf16.mxu0 0
        %298 = vmatpush1.bf16.msra.mxu0 %v281
        %299 = vmatprep.subr.bf16.mxu0 0
        %300 = vmatpush1.bf16.msra.mxu0 %v282
        %301 = vmatprep.subr.bf16.mxu0 0
        %302 = vmatpush1.bf16.msra.mxu0 %v283
        %303 = vmatprep.subr.bf16.mxu0 0
        %304 = vmatpush1.bf16.msra.mxu0 %v284
        %305 = vmatprep.subr.bf16.mxu0 0
        %306 = vmatpush1.bf16.msra.mxu0 %v285
        %307 = vmatprep.subr.bf16.mxu0 0
        %308 = vmatpush1.bf16.msra.mxu0 %v286
        %309 = vmatprep.subr.bf16.mxu0 0
        %310 = vmatpush1.bf16.msra.mxu0 %v287
        %311 = vmatprep.subr.bf16.mxu0 0
        %312 = vmatpush1.bf16.msra.mxu0 %v288
        %313 = vmatprep.subr.bf16.mxu0 0
        %314 = vmatpush1.bf16.msra.mxu0 0
        %315 = vmatprep.subr.bf16.mxu0 0
        %316 = vmatpush1.bf16.msra.mxu0 0
        %317 = vmatprep.subr.bf16.mxu0 0
        %318 = vmatpush1.bf16.msra.mxu0 0
        %319 = vmatprep.subr.bf16.mxu0 0
        %320 = vmatpush1.bf16.msra.mxu0 0
        %321 = vmatprep.subr.bf16.mxu0 0
        %322 = vmatpush1.bf16.msra.mxu0 0
        %323 = vmatprep.subr.bf16.mxu0 0
        %324 = vmatpush1.bf16.msra.mxu0 0
        %325 = vmatprep.subr.bf16.mxu0 0
        %326 = vmatpush1.bf16.msra.mxu0 0
        %327 = vmatprep.subr.bf16.mxu0 0
        %328 = vmatpush1.bf16.msra.mxu0 0
        %329 = vmatprep.mubr.bf16.mxu0 0
        %330 = vmatmul.mubr.bf16.gmra.mrb[0].mxu0 %v247
        %v331 = vpop.f32.mrb[0].mxu0
        %v332 = vadd.f32 0.0, %v331
        %v333 = vpop.f32.mrb[0].mxu0
        %v334 = vpop.f32.mrb[0].mxu0
        %v335 = vadd.f32 0.0, %v334
        %v336 = vpop.f32.mrb[0].mxu0
        %337 = vdwg.mxu0
        %v338 = vadd.f32 %v223, %v332
        %v339 = vadd.f32 %v224, %v335
        %340 = vst [vmem:[%s212] sm:$0xff] %v338
        %341 = vst [vmem:[%s212 + $0x8] sm:$0xff] %v339
        %s342 = sand.u32 %s105, 1
        %s343 = scalar_lea.sflag [#allocation4], %s342
        %s344 = sand.u32 %s105, 1
        %s345 = smul.addr %s344, 16
        %s346 = scalar_lea.vmem [#allocation7], %s345
        // Predicated region
        $region41: #{tpu_custom_call.1} parent=27 // pred_check
          %p347 = pneg %p115
        $region42: #{tpu_custom_call.1} parent=27 // pred_check_branch
          %349 = sbr.rel (%p347) target = $region44
        $region43: #{tpu_custom_call.1} parent=27 // pred_region
          %s350 = smul.u32 2, %s25
          %s352 = ssub.s32 256, 256
          %353 = vsyncadd %s343, %s352
          %s354 = smul.addr %s350, 2
          %s355 = sadd.s32 %s26, %s354
          %s356 = smul.addr %s355, 128
          %s357 = scalar_lea.hbm %s2, %s356
          %s358 = sshll.u32 %s346, 4
          %s359 = int_to_ptr.vmem [resolvable:$true] %s358
          %364 = dma.vmem_to_hbm [thread:$0]  %s359, 256, %s357, %s343, 128, 256, 8
        $region44: #{tpu_custom_call.1} parent=27 // pred_fallthru
          _
      $region28: #{tpu_custom_call.1} parent=5 // pred_fallthru
        _
      %p365 = scmp.le.s32.totalorder 2, %s15
      // Predicated region
      $region45: #{tpu_custom_call.1} parent=5 // pred_check
        %p366 = pneg %p365
      $region46: #{tpu_custom_call.1} parent=5 // pred_check_branch
        %368 = sbr.rel (%p366) target = $region48
      $region47: #{tpu_custom_call.1} parent=5 // pred_region
        %s369 = ssub.s32 %s15, 2
        // Predicated region
        $region49: #{tpu_custom_call.1} parent=47 // pred_check
          %p370 = pneg %p121
        $region50: #{tpu_custom_call.1} parent=47 // pred_check_branch
          %372 = sbr.rel (%p370) target = $region52
        $region51: #{tpu_custom_call.1} parent=47 // pred_region
          %s373 = sand.u32 %s106, 1
          %s374 = scalar_lea.sflag [#allocation4], %s373
          %s375 = sand.u32 %s106, 1
          %s376 = smul.addr %s375, 16
          %s377 = scalar_lea.vmem [#allocation7], %s376
          %378 = dma.done %s374, 256
        $region52: #{tpu_custom_call.1} parent=47 // pred_fallthru
          _
      $region48: #{tpu_custom_call.1} parent=5 // pred_fallthru
        _
    $region6: #{tpu_custom_call.1} parent=1 // loop_footer
      %s19 = sadd.s32 1, %s15
    $region7: #{tpu_custom_call.1} parent=1 // loop_footer_branch
      %14 = sbr.rel target = $region3
    $region8: #{tpu_custom_call.1} parent=1 // loop_exit
      _
    %379 = vsyncpa [#allocation3], 1
    %s380 = scalar_lea.sflag [#allocation3], 1
    %381 = vsyncpa %s380, 1
    %382 = vsyncpa [#allocation6], 1
    %s383 = scalar_lea.sflag [#allocation6], 1
    %384 = vsyncpa %s383, 1
    %385 = vsyncpa [#allocation4], 1
    %s386 = scalar_lea.sflag [#allocation4], 1
    %387 = vsyncpa %s386, 1

</llo_original>
